<compile_context>
chip_gen: v7x
topology: tpu7x:2x2x1
jax: 0.10.0
libtpu: 0.0.40
codegen_flags: <defaults>
</compile_context>

<pallas_src>
import jax
import jax.numpy as jnp
from jax.experimental import pallas as pl
from jax.experimental.pallas import tpu as pltpu


def _round_up(x, m):
    return ((x + m - 1) // m) * m


# ---------------------------------------------------------------------------
# Pallas kernel: fused  ConvT1+LeakyReLU -> [concat skip] -> ConvT2+LeakyReLU
# ---------------------------------------------------------------------------
def _fused_upsample_kernel(x1_ref, skip_ref, w1_ref, b1_ref, w2_ref, b2_ref, o_ref):
    n1 = w1_ref.shape[1]                                   # 4*Cout1 (= 64)

    # ---- layer 1: (Mblk, Cin1) @ (Cin1, 4*Cout1) + bias, LeakyReLU(0.2) ------
    y1 = jnp.dot(x1_ref[...], w1_ref[...], preferred_element_type=jnp.float32)
    y1 = y1 + b1_ref[...]
    y1 = jnp.maximum(y1, 0.2 * y1).astype(jnp.bfloat16)    # (Mblk, 64) -- stays on chip

    # ---- layer 2: concat(y1, skip) @ W2, done as two lane-dense K=64 dots ----
    # w2 is the stacked block-diagonal weight: rows [:n1] multiply the layer-1
    # result, rows [n1:] multiply the skip rows -> the concat never materializes.
    w2 = w2_ref[...]
    y2 = jnp.dot(y1, w2[:n1], preferred_element_type=jnp.float32)
    y2 = y2 + jnp.dot(skip_ref[...], w2[n1:], preferred_element_type=jnp.float32)
    y2 = y2 + b2_ref[...]
    o_ref[...] = jnp.maximum(y2, 0.2 * y2).astype(o_ref.dtype)


def _fused_upsample_call(x1, skip2d, w1p, b1p, w2p, b2p):
    M, Cin1 = x1.shape
    Ns = skip2d.shape[1]          # 4 * skip_channels (= 64)
    N1 = w1p.shape[1]             # 4 * Cout1         (= 64)
    K2, N2 = w2p.shape            # (128, 256) -> lane-dense output (multiple of 128)

    # Tile M: at least 2 "parallel" steps (feeds both v7x TensorCores), at most
    # 512 rows/step so activation blocks double-buffer comfortably under the
    # default scoped VMEM on every generation (v7x: 32 MiB scoped / 64 MiB phys).
    if M <= 16:
        mblk = M
    else:
        mblk = min(512, _round_up(pl.cdiv(M, 2), 16))
    grid_m = pl.cdiv(M, mblk)

    flops = 2 * M * Cin1 * N1 + 2 * M * K2 * N2
    bytes_accessed = (x1.size * x1.dtype.itemsize
                      + skip2d.size * skip2d.dtype.itemsize
                      + w1p.size * w1p.dtype.itemsize
                      + w2p.size * w2p.dtype.itemsize
                      + b1p.size * 4 + b2p.size * 4
                      + M * N2 * 4)

    return pl.pallas_call(
        _fused_upsample_kernel,
        out_shape=jax.ShapeDtypeStruct((M, N2), jnp.float32),
        grid_spec=pltpu.PrefetchScalarGridSpec(
            num_scalar_prefetch=0,
            grid=(grid_m,),
            in_specs=[
                pl.BlockSpec((mblk, Cin1), lambda i: (i, 0)),   # activations: tiled over M
                pl.BlockSpec((mblk, Ns), lambda i: (i, 0)),
                pl.BlockSpec((Cin1, N1), lambda i: (0, 0)),     # weights: resident
                pl.BlockSpec((1, N1), lambda i: (0, 0)),
                pl.BlockSpec((K2, N2), lambda i: (0, 0)),
                pl.BlockSpec((1, N2), lambda i: (0, 0)),
            ],
            out_specs=pl.BlockSpec((mblk, N2), lambda i: (i, 0)),
        ),
        compiler_params=pltpu.CompilerParams(dimension_semantics=("parallel",)),
        cost_estimate=pl.CostEstimate(flops=flops, transcendentals=0,
                                      bytes_accessed=bytes_accessed),
    )(x1, skip2d, w1p, b1p, w2p, b2p)


# ---------------------------------------------------------------------------
# Parameter init (deterministic, kaiming-normal-style as in layer_init)
# ---------------------------------------------------------------------------
def init_params(key):
    a = jnp.sqrt(2.0 / (1.0 + 0.2 ** 2))           # value passed as `a` in the module
    gain = jnp.sqrt(2.0 / (1.0 + a ** 2))           # kaiming gain with that slope
    k1, k2 = jax.random.split(key)

    def kaiming(k, shape):
        fan_in = shape[1] * shape[2] * shape[3]     # PyTorch convention: size(1)*kh*kw
        std = gain / jnp.sqrt(jnp.float32(fan_in))
        return jax.random.normal(k, shape, jnp.float32) * std

    return {
        "w1": kaiming(k1, (16, 16, 2, 2)),   # ConvTranspose2d(16 -> 16, k=2, s=2)
        "b1": jnp.zeros((16,), jnp.float32),
        "w2": kaiming(k2, (32, 16, 2, 2)),   # ConvTranspose2d(32 -> 16, k=2, s=2)
        "b2": jnp.zeros((16,), jnp.float32),
    }


# ---------------------------------------------------------------------------
# One-time weight packing (hoisted out of the per-call forward)
# ---------------------------------------------------------------------------
def pack_params(params):
    """Call once at init / after each optimizer update; pass the result to forward.

    Layer-1 weight -> (Cin, 4*Cout1), columns ordered (ki1, kj1, c1).
    Layer-2 weight -> stacked block-diagonal (4*Cout1 + 4*Cs, 16*Cout2):
      rows : (ki1, kj1, cin), y1 rows on top, skip rows below,
      cols : (c2, ki1, ki2, kj1, kj2) -- chosen so the post-kernel permute keeps
             (kj1, kj2) as contiguous minor dims next to j.
    """
    w1, b1, w2, b2 = params["w1"], params["b1"], params["w2"], params["b2"]
    C1, C1o = w1.shape[0], w1.shape[1]
    C2o = w2.shape[1]

    # (Cin, Cout, kh, kw) -> (Cin, kh, kw, Cout) -> (Cin, 4*Cout)
    w1p = jnp.transpose(w1, (0, 2, 3, 1)).reshape(C1, 4 * C1o)
    b1p = jnp.tile(b1, 4).reshape(1, 4 * C1o)

    eye2 = jnp.eye(2, dtype=w2.dtype)

    def block_diag(w):    # (Cin_part, Cout, 2, 2) -> (4*Cin_part, 16*Cout)
        t = jnp.einsum("ax,by,cdij->abcdxiyj", eye2, eye2, w)
        return t.reshape(4 * w.shape[0], 16 * w.shape[1])

    w2p = jnp.concatenate([block_diag(w2[:C1o]), block_diag(w2[C1o:])], axis=0)
    b2p = jnp.repeat(b2, 16).reshape(1, 16 * C2o)

    return {
        "w1p": w1p.astype(jnp.bfloat16),
        "b1p": b1p.astype(jnp.float32),
        "w2p": w2p.astype(jnp.bfloat16),
        "b2p": b2p.astype(jnp.float32),
    }


# ---------------------------------------------------------------------------
# Forward pass (mirrors UpsampleCNN.forward; skip0 == skip_feats[0])
# ---------------------------------------------------------------------------
@jax.jit
def upsample_cnn_forward(packed, selfAttn_outFeats, skip0):
    slicing_factor = 16
    B = selfAttn_outFeats.shape[0]

    # out = selfAttn_outFeats.reshape(B, 16, 8, -1)    (NCHW)
    out_nchw = selfAttn_outFeats.reshape(B, slicing_factor, 8, -1)
    _, C1, H1, W1 = out_nchw.shape
    M = B * H1 * W1

    # layer-1 input rows (M, C1), rows ordered (b, i, j); bf16 halves HBM traffic.
    x1 = jnp.transpose(out_nchw, (0, 2, 3, 1)).reshape(M, C1).astype(jnp.bfloat16)

    # skip (NCHW at 2H1 x 2W1) regrouped to layer-1 row order:
    #   skip2d[(b,i,j), (ki1,kj1,c)] = skip0[b, c, 2i+ki1, 2j+kj1]
    Cs = skip0.shape[1]
    skip2d = jnp.transpose(skip0.reshape(B, Cs, H1, 2, W1, 2),
                           (0, 2, 4, 3, 5, 1)).reshape(M, 4 * Cs).astype(jnp.bfloat16)

    # fused kernel: both ConvT(k=2,s=2)+LeakyReLU layers and the channel concat.
    y = _fused_upsample_call(x1, skip2d, packed["w1p"], packed["b1p"],
                             packed["w2p"], packed["b2p"])           # (M, 16*Cout2) f32

    # ---- final assembly == PyTorch's NCHW view/reshape/permute ---------------
    # y cols are (c2, ki1, ki2, kj1, kj2);  final[b, c2*H2 + h, w, 0] with
    #   h = 4i + 2*ki1 + ki2,   w = 4j + 2*kj1 + kj2,   H2 = 4*H1,  W2 = 4*W1
    C2o = packed["b2p"].shape[1] // 16
    y = y.reshape(B, H1, W1, C2o, 2, 2, 2, 2)        # (b, i, j, c2, ki1, ki2, kj1, kj2)
    y = jnp.transpose(y, (0, 3, 1, 4, 5, 2, 6, 7))   # (b, c2, i, ki1, ki2, j, kj1, kj2)
    H2, W2 = 4 * H1, 4 * W1
    # module hard-codes Cout2 == slicing_factor == 16, so the trailing dim is 1
    # TODO(synk): downstream consumers that accept (B, 512, 32) could drop the size-1
    #             trailing dim for better lane utilization; kept here for module parity.
    return y.reshape(B, slicing_factor * H2, W2, C2o // slicing_factor)


# ---------------------------------------------------------------------------
# Pure-JAX reference of the PyTorch forward (correctness checks only)
# ---------------------------------------------------------------------------
def _ref_forward(params, selfAttn_outFeats, skip0, quantize=False):
    """quantize=True replicates the kernel's bf16 rounding points (tight check)."""
    cast = (lambda t: t.astype(jnp.bfloat16)) if quantize else (lambda t: t)

    def leaky(x):
        return jnp.maximum(x, 0.2 * x)

    def convt2x2(x, w, b):  # x NCHW, w (Cin, Cout, 2, 2), stride 2
        Bx, C, H, W = x.shape
        O = w.shape[1]
        y = jnp.einsum("bcij,conm->boinjm", cast(x), cast(w),
                       preferred_element_type=jnp.float32,
                       precision=jax.lax.Precision.HIGHEST)
        y = y.reshape(Bx, O, 2 * H, 2 * W)
        return y + b[None, :, None, None]

    B = selfAttn_outFeats.shape[0]
    out = selfAttn_outFeats.reshape(B, 16, 8, -1)
    out = leaky(convt2x2(out, params["w1"], params["b1"]))
    if quantize:
        out = out.astype(jnp.bfloat16).astype(jnp.float32)
    out = jnp.concatenate([out, skip0], axis=1)
    out = leaky(convt2x2(out, params["w2"], params["b2"]))
    Bo, C, H2, W2 = out.shape
    out = out.reshape(Bo, C // 16, 16, H2, W2).reshape(Bo, C // 16, 16 * H2, W2)
    return jnp.transpose(out, (0, 2, 3, 1))


if __name__ == "__main__":
    key = jax.random.PRNGKey(0)
    kp, kx, ks = jax.random.split(key, 3)

    params = init_params(kp)
    packed = pack_params(params)     # one-time packing (not part of per-call cost)

    # selfAttn_outFeats: (B=2, seq=8, hidden=128) -> reshape(B, 16, 8, 8) NCHW
    selfAttn_outFeats = jax.random.normal(kx, (2, 8, 128), jnp.float32)
    # skip_feats[0] must match layer-1 output: (B, 16, 16, 16) in NCHW
    skip0 = jax.random.normal(ks, (2, 16, 16, 16), jnp.float32)

    out = jax.block_until_ready(upsample_cnn_forward(packed, selfAttn_outFeats, skip0))

    assert out.shape == (2, 512, 32, 1), out.shape
    assert out.dtype == jnp.float32

    # Tight check vs a reference with the same bf16 quantization points.
    ref_q = jax.block_until_ready(_ref_forward(params, selfAttn_outFeats, skip0, quantize=True))
    err_q = float(jnp.max(jnp.abs(out - ref_q)))
    assert err_q < 5e-3, err_q

    # Loose check vs the full-f32 reference (bounds the bf16 quantization error).
    ref_f = jax.block_until_ready(_ref_forward(params, selfAttn_outFeats, skip0, quantize=False))
    err_f = float(jnp.max(jnp.abs(out - ref_f)))
    assert err_f < 5e-2, err_f

    print("KERNEL_OK")
</pallas_src>

<mosaic_0001>
module attributes {stable_mosaic.version = 11 : i64} {
  func.func @_fused_upsample_kernel(%arg0: i32, %arg1: memref<64x16xbf16, #tpu.memory_space<vmem>>, %arg2: memref<64x64xbf16, #tpu.memory_space<vmem>>, %arg3: memref<16x64xbf16, #tpu.memory_space<vmem>>, %arg4: memref<1x64xf32, #tpu.memory_space<vmem>>, %arg5: memref<128x256xbf16, #tpu.memory_space<vmem>>, %arg6: memref<1x256xf32, #tpu.memory_space<vmem>>, %arg7: memref<64x256xf32, #tpu.memory_space<vmem>>) attributes {dimension_semantics = [#tpu.dimension_semantics<parallel>], iteration_bounds = array<i64: 2>, scalar_prefetch = 0 : i64, scratch_operands = 0 : i64, tpu.core_type = #tpu.core_type<tc>, window_params = [{transform_indices = @transform_0, window_bounds = array<i64: 64, 16>}, {transform_indices = @transform_1, window_bounds = array<i64: 64, 64>}, {pipeline_mode = #tpu.pipeline_mode<synchronous>, transform_indices = @transform_2, window_bounds = array<i64: 16, 64>}, {pipeline_mode = #tpu.pipeline_mode<synchronous>, transform_indices = @transform_3, window_bounds = array<i64: 1, 64>}, {pipeline_mode = #tpu.pipeline_mode<synchronous>, transform_indices = @transform_4, window_bounds = array<i64: 128, 256>}, {pipeline_mode = #tpu.pipeline_mode<synchronous>, transform_indices = @transform_5, window_bounds = array<i64: 1, 256>}, {transform_indices = @transform_6, window_bounds = array<i64: 64, 256>}]} {
    %c0 = arith.constant 0 : index
    %c0_0 = arith.constant 0 : index
    %0 = vector.load %arg1[%c0, %c0_0] : memref<64x16xbf16, #tpu.memory_space<vmem>>, vector<64x16xbf16>
    %c0_1 = arith.constant 0 : index
    %c0_2 = arith.constant 0 : index
    %1 = vector.load %arg3[%c0_1, %c0_2] : memref<16x64xbf16, #tpu.memory_space<vmem>>, vector<16x64xbf16>
    %cst = arith.constant dense<0.000000e+00> : vector<64x64xf32>
    %2 = tpu.matmul %0, %1, %cst {dimension_numbers = #tpu.dot_dimension_numbers<[1], [0], [0], [1], [0, 0, 1, 1], [], []>} : vector<64x16xbf16>, vector<16x64xbf16>, vector<64x64xf32> -> vector<64x64xf32>
    %c0_3 = arith.constant 0 : index
    %c0_4 = arith.constant 0 : index
    %3 = vector.load %arg4[%c0_3, %c0_4] : memref<1x64xf32, #tpu.memory_space<vmem>>, vector<1x64xf32>
    %4 = vector.broadcast %3 : vector<1x64xf32> to vector<64x64xf32>
    %5 = arith.addf %2, %4 : vector<64x64xf32>
    %cst_5 = arith.constant 2.000000e-01 : f32
    %6 = vector.broadcast %cst_5 : f32 to vector<64x64xf32>
    %7 = arith.mulf %6, %5 : vector<64x64xf32>
    %8 = arith.maximumf %5, %7 : vector<64x64xf32>
    %9 = arith.truncf %8 : vector<64x64xf32> to vector<64x64xbf16>
    %c0_6 = arith.constant 0 : index
    %c0_7 = arith.constant 0 : index
    %10 = vector.load %arg5[%c0_6, %c0_7] : memref<128x256xbf16, #tpu.memory_space<vmem>>, vector<128x256xbf16>
    %11 = vector.extract_strided_slice %10 {offsets = [0, 0], sizes = [64, 256], strides = [1, 1]} : vector<128x256xbf16> to vector<64x256xbf16>
    %cst_8 = arith.constant dense<0.000000e+00> : vector<64x256xf32>
    %12 = tpu.matmul %9, %11, %cst_8 {dimension_numbers = #tpu.dot_dimension_numbers<[1], [0], [0], [1], [0, 0, 1, 1], [], []>} : vector<64x64xbf16>, vector<64x256xbf16>, vector<64x256xf32> -> vector<64x256xf32>
    %c0_9 = arith.constant 0 : index
    %c0_10 = arith.constant 0 : index
    %13 = vector.load %arg2[%c0_9, %c0_10] : memref<64x64xbf16, #tpu.memory_space<vmem>>, vector<64x64xbf16>
    %14 = vector.extract_strided_slice %10 {offsets = [64, 0], sizes = [64, 256], strides = [1, 1]} : vector<128x256xbf16> to vector<64x256xbf16>
    %cst_11 = arith.constant dense<0.000000e+00> : vector<64x256xf32>
    %15 = tpu.matmul %13, %14, %cst_11 {dimension_numbers = #tpu.dot_dimension_numbers<[1], [0], [0], [1], [0, 0, 1, 1], [], []>} : vector<64x64xbf16>, vector<64x256xbf16>, vector<64x256xf32> -> vector<64x256xf32>
    %16 = arith.addf %12, %15 : vector<64x256xf32>
    %c0_12 = arith.constant 0 : index
    %c0_13 = arith.constant 0 : index
    %17 = vector.load %arg6[%c0_12, %c0_13] : memref<1x256xf32, #tpu.memory_space<vmem>>, vector<1x256xf32>
    %18 = vector.broadcast %17 : vector<1x256xf32> to vector<64x256xf32>
    %19 = arith.addf %16, %18 : vector<64x256xf32>
    %cst_14 = arith.constant 2.000000e-01 : f32
    %20 = vector.broadcast %cst_14 : f32 to vector<64x256xf32>
    %21 = arith.mulf %20, %19 : vector<64x256xf32>
    %22 = arith.maximumf %19, %21 : vector<64x256xf32>
    %c0_15 = arith.constant 0 : index
    %c0_16 = arith.constant 0 : index
    %23 = vector.load %arg7[%c0_15, %c0_16] : memref<64x256xf32, #tpu.memory_space<vmem>>, vector<64x256xf32>
    tpu.vector_store %arg7[%c0_15, %c0_16], %22 {strides = array<i32>} : memref<64x256xf32, #tpu.memory_space<vmem>>, vector<64x256xf32>,
    return
  }
  func.func @transform_0(%arg0: i32) -> (i32, i32) {
    %c0_i32 = arith.constant 0 : i32
    %c0_i32_0 = arith.constant 0 : i32
    return %arg0, %c0_i32 : i32, i32
  }
  func.func @transform_1(%arg0: i32) -> (i32, i32) {
    %c0_i32 = arith.constant 0 : i32
    %c0_i32_0 = arith.constant 0 : i32
    return %arg0, %c0_i32 : i32, i32
  }
  func.func @transform_2(%arg0: i32) -> (i32, i32) {
    %c0_i32 = arith.constant 0 : i32
    %c0_i32_0 = arith.constant 0 : i32
    %c0_i32_1 = arith.constant 0 : i32
    return %c0_i32, %c0_i32_0 : i32, i32
  }
  func.func @transform_3(%arg0: i32) -> (i32, i32) {
    %c0_i32 = arith.constant 0 : i32
    %c0_i32_0 = arith.constant 0 : i32
    %c0_i32_1 = arith.constant 0 : i32
    return %c0_i32, %c0_i32_0 : i32, i32
  }
  func.func @transform_4(%arg0: i32) -> (i32, i32) {
    %c0_i32 = arith.constant 0 : i32
    %c0_i32_0 = arith.constant 0 : i32
    %c0_i32_1 = arith.constant 0 : i32
    return %c0_i32, %c0_i32_0 : i32, i32
  }
  func.func @transform_5(%arg0: i32) -> (i32, i32) {
    %c0_i32 = arith.constant 0 : i32
    %c0_i32_0 = arith.constant 0 : i32
    %c0_i32_1 = arith.constant 0 : i32
    return %c0_i32, %c0_i32_0 : i32, i32
  }
  func.func @transform_6(%arg0: i32) -> (i32, i32) {
    %c0_i32 = arith.constant 0 : i32
    %c0_i32_0 = arith.constant 0 : i32
    return %arg0, %c0_i32 : i32, i32
  }
}

</mosaic_0001>

<llo_original>
// kernel: upsample_cnn_forward.1
$region0: #{upsample_cnn_forward.1}
  #allocation0 [shape = 'u32[]', space=smem, size = 0x4, offset = 0x4, fixed_abs, tag = 'smem constant byte address 0x4 - core index']
  #allocation1 [shape = 'u32[144,128]{1,0:T(1,128)}', space=vmem, size = 0x12000, scoped, tag = 'internal scratch']
  %s0 = inlined_call_operand.vmem [shape: bf16[128,16], index: 0, kind: input, shape index: {}]
  %s1 = inlined_call_operand.vmem [shape: bf16[128,64], index: 1, kind: input, shape index: {}]
  %s2 = inlined_call_operand.hbm [shape: bf16[16,64], index: 2, kind: input, shape index: {}]
  %s3 = inlined_call_operand.hbm [shape: f32[1,64], index: 3, kind: input, shape index: {}]
  %s4 = inlined_call_operand.hbm [shape: bf16[128,256], index: 4, kind: input, shape index: {}]
  %s5 = inlined_call_operand.hbm [shape: f32[1,256], index: 5, kind: input, shape index: {}]
  %s6 = inlined_call_operand.vmem [shape: f32[128,256], index: 6, kind: output, shape index: {}]
  %s7 = sld [smem:[#allocation0]]
  $region73: #{upsample_cnn_forward.1} parent=0
    _
  %s9 = ssub.s32 1, %s7
  %s10 = scalar_select 0, %s9, %s7
  $region1: #{upsample_cnn_forward.1} parent=0
    #allocation2 [shape = 'u8[4096]{0}', space=vmem, size = 0x1000, scoped, tag = 'input window, operand 2, single buffered']
    #allocation3 [shape = 's32[2]{0}', space=sflag, size = 0x8, scoped, tag = 'scoped memory for upsample_cnn_forward.1']
    #allocation4 [shape = 'u8[512]{0}', space=vmem, size = 0x400, scoped, tag = 'input window, operand 3, single buffered']
    #allocation5 [shape = 's32[1]{0}', space=sflag, size = 0x4, scoped, tag = 'scoped memory for upsample_cnn_forward.1']
    #allocation6 [shape = 'u8[65536]{0}', space=vmem, size = 0x10000, scoped, tag = 'input window, operand 4, single buffered']
    #allocation7 [shape = 'u8[1024]{0}', space=vmem, size = 0x400, scoped, tag = 'input window, operand 5, single buffered']
    #allocation8 [shape = 's32[1]{0}', space=sflag, size = 0x4, scoped, tag = 'scoped memory for upsample_cnn_forward.1']
    %11 = vsyncpa [#allocation3], 0
    %12 = vsyncpa [#allocation5], 0
    %13 = vsyncpa [#allocation8], 0
    loop: start=0, step=1, limit=4
    $region2: #{upsample_cnn_forward.1} parent=1 // loop_pre_header
      _
    $region3: #{upsample_cnn_forward.1} parent=1 // loop_header
      %s15 = sphi 0, %s19
      %p16 = scmp.ge.s32.totalorder %s15, 4
      %s25 = sphi 0, %s27
      %s28 = sphi 0, %s25
      %s29 = sphi 0, %s28
      %s45 = sphi 0, %s29
      %s51 = sphi 0, %s53
      %s54 = sphi 0, %s51
      %s55 = sphi 0, %s54
      %s71 = sphi 0, %s55
      %s75 = sphi 0, %s75
      %s77 = sphi 0, %s75
      %s78 = sphi 0, %s77
      %s92 = sphi 0, %s78
      %s96 = sphi 0, %s96
      %s98 = sphi 0, %s96
      %s99 = sphi 0, %s98
      %s113 = sphi 0, %s99
      %s117 = sphi 0, %s117
      %s119 = sphi 0, %s117
      %s120 = sphi 0, %s119
      %s134 = sphi 0, %s120
      %s138 = sphi 0, %s138
      %s140 = sphi 0, %s138
      %s141 = sphi 0, %s140
      %s155 = sphi 0, %s141
      %s161 = sphi 0, %s163
      %s164 = sphi 0, %s161
      %s165 = sphi 0, %s164
      %s181 = sphi 0, %s165
    $region4: #{upsample_cnn_forward.1} parent=1 // loop_header_branch
      %18 = sbr.rel (%p16) target = $region8
    $region5: #{upsample_cnn_forward.1} parent=1 // loop_body
      %s20 = ssub.s32 %s15, 1
      %s21 = ssub.s32 %s15, 2
      %s22 = sadd.s32 %s15, 1
      %s23 = ssub.s32 %s15, %s22
      %p24 = scmp.eq.s32.totalorder %s23, 0
      %s26 = sadd.s32 %s25, 1
      %s27 = scalar_select %p24, %s25, %s26
      %p30 = pneg %p24
      %p31 = scmp.eq.s32.totalorder %s15, 1
      %p32 = por %p30, %p31
      %p33 = scmp.ne.s32.totalorder %s25, %s28
      %p34 = scmp.eq.s32.totalorder %s15, 0
      %p35 = por %p33, %p34
      %p36 = scmp.ne.s32.totalorder %s25, %s28
      %p37 = scmp.eq.s32.totalorder %s20, 1
      %p38 = por %p36, %p37
      %p39 = scmp.ne.s32.totalorder %s28, %s29
      %p40 = scmp.eq.s32.totalorder %s20, 0
      %p41 = por %p39, %p40
      %p42 = scmp.ne.s32.totalorder %s28, %s29
      %p43 = scmp.eq.s32.totalorder %s21, 1
      %p44 = por %p42, %p43
      %p46 = scmp.ne.s32.totalorder %s29, %s45
      %p47 = scmp.eq.s32.totalorder %s21, 0
      %p48 = por %p46, %p47
      %s49 = ssub.s32 %s15, %s22
      %p50 = scmp.eq.s32.totalorder %s49, 0
      %s52 = sadd.s32 %s51, 1
      %s53 = scalar_select %p50, %s51, %s52
      %p56 = pneg %p50
      %p57 = scmp.eq.s32.totalorder %s15, 1
      %p58 = por %p56, %p57
      %p59 = scmp.ne.s32.totalorder %s51, %s54
      %p60 = scmp.eq.s32.totalorder %s15, 0
      %p61 = por %p59, %p60
      %p62 = scmp.ne.s32.totalorder %s51, %s54
      %p63 = scmp.eq.s32.totalorder %s20, 1
      %p64 = por %p62, %p63
      %p65 = scmp.ne.s32.totalorder %s54, %s55
      %p66 = scmp.eq.s32.totalorder %s20, 0
      %p67 = por %p65, %p66
      %p68 = scmp.ne.s32.totalorder %s54, %s55
      %p69 = scmp.eq.s32.totalorder %s21, 1
      %p70 = por %p68, %p69
      %p72 = scmp.ne.s32.totalorder %s55, %s71
      %p73 = scmp.eq.s32.totalorder %s21, 0
      %p74 = por %p72, %p73
      %s76 = sadd.s32 %s75, 1
      %p79 = scmp.eq.s32.totalorder %s15, 1
      %p80 = scmp.ne.s32.totalorder %s75, %s77
      %p81 = scmp.eq.s32.totalorder %s15, 0
      %p82 = por %p80, %p81
      %p83 = scmp.ne.s32.totalorder %s75, %s77
      %p84 = scmp.eq.s32.totalorder %s20, 1
      %p85 = por %p83, %p84
      %p86 = scmp.ne.s32.totalorder %s77, %s78
      %p87 = scmp.eq.s32.totalorder %s20, 0
      %p88 = por %p86, %p87
      %p89 = scmp.ne.s32.totalorder %s77, %s78
      %p90 = scmp.eq.s32.totalorder %s21, 1
      %p91 = por %p89, %p90
      %p93 = scmp.ne.s32.totalorder %s78, %s92
      %p94 = scmp.eq.s32.totalorder %s21, 0
      %p95 = por %p93, %p94
      %s97 = sadd.s32 %s96, 1
      %p100 = scmp.eq.s32.totalorder %s15, 1
      %p101 = scmp.ne.s32.totalorder %s96, %s98
      %p102 = scmp.eq.s32.totalorder %s15, 0
      %p103 = por %p101, %p102
      %p104 = scmp.ne.s32.totalorder %s96, %s98
      %p105 = scmp.eq.s32.totalorder %s20, 1
      %p106 = por %p104, %p105
      %p107 = scmp.ne.s32.totalorder %s98, %s99
      %p108 = scmp.eq.s32.totalorder %s20, 0
      %p109 = por %p107, %p108
      %p110 = scmp.ne.s32.totalorder %s98, %s99
      %p111 = scmp.eq.s32.totalorder %s21, 1
      %p112 = por %p110, %p111
      %p114 = scmp.ne.s32.totalorder %s99, %s113
      %p115 = scmp.eq.s32.totalorder %s21, 0
      %p116 = por %p114, %p115
      %s118 = sadd.s32 %s117, 1
      %p121 = scmp.eq.s32.totalorder %s15, 1
      %p122 = scmp.ne.s32.totalorder %s117, %s119
      %p123 = scmp.eq.s32.totalorder %s15, 0
      %p124 = por %p122, %p123
      %p125 = scmp.ne.s32.totalorder %s117, %s119
      %p126 = scmp.eq.s32.totalorder %s20, 1
      %p127 = por %p125, %p126
      %p128 = scmp.ne.s32.totalorder %s119, %s120
      %p129 = scmp.eq.s32.totalorder %s20, 0
      %p130 = por %p128, %p129
      %p131 = scmp.ne.s32.totalorder %s119, %s120
      %p132 = scmp.eq.s32.totalorder %s21, 1
      %p133 = por %p131, %p132
      %p135 = scmp.ne.s32.totalorder %s120, %s134
      %p136 = scmp.eq.s32.totalorder %s21, 0
      %p137 = por %p135, %p136
      %s139 = sadd.s32 %s138, 1
      %p142 = scmp.eq.s32.totalorder %s15, 1
      %p143 = scmp.ne.s32.totalorder %s138, %s140
      %p144 = scmp.eq.s32.totalorder %s15, 0
      %p145 = por %p143, %p144
      %p146 = scmp.ne.s32.totalorder %s138, %s140
      %p147 = scmp.eq.s32.totalorder %s20, 1
      %p148 = por %p146, %p147
      %p149 = scmp.ne.s32.totalorder %s140, %s141
      %p150 = scmp.eq.s32.totalorder %s20, 0
      %p151 = por %p149, %p150
      %p152 = scmp.ne.s32.totalorder %s140, %s141
      %p153 = scmp.eq.s32.totalorder %s21, 1
      %p154 = por %p152, %p153
      %p156 = scmp.ne.s32.totalorder %s141, %s155
      %p157 = scmp.eq.s32.totalorder %s21, 0
      %p158 = por %p156, %p157
      %s159 = ssub.s32 %s15, %s22
      %p160 = scmp.eq.s32.totalorder %s159, 0
      %s162 = sadd.s32 %s161, 1
      %s163 = scalar_select %p160, %s161, %s162
      %p166 = pneg %p160
      %p167 = scmp.eq.s32.totalorder %s15, 1
      %p168 = por %p166, %p167
      %p169 = scmp.ne.s32.totalorder %s161, %s164
      %p170 = scmp.eq.s32.totalorder %s15, 0
      %p171 = por %p169, %p170
      %p172 = scmp.ne.s32.totalorder %s161, %s164
      %p173 = scmp.eq.s32.totalorder %s20, 1
      %p174 = por %p172, %p173
      %p175 = scmp.ne.s32.totalorder %s164, %s165
      %p176 = scmp.eq.s32.totalorder %s20, 0
      %p177 = por %p175, %p176
      %p178 = scmp.ne.s32.totalorder %s164, %s165
      %p179 = scmp.eq.s32.totalorder %s21, 1
      %p180 = por %p178, %p179
      %p182 = scmp.ne.s32.totalorder %s165, %s181
      %p183 = scmp.eq.s32.totalorder %s21, 0
      %p184 = por %p182, %p183
      %p185 = scmp.le.s32.totalorder 1, %s15
      %p186 = scmp.lt.s32.totalorder %s15, 3
      %p187 = pnand %p185, %p186
      %p188 = pneg %p187
      // Predicated region
      $region9: #{upsample_cnn_forward.1} parent=5 // pred_check
        _
      $region10: #{upsample_cnn_forward.1} parent=5 // pred_check_branch
        %190 = sbr.rel (%p187) target = $region12
      $region11: #{upsample_cnn_forward.1} parent=5 // pred_region
        %s191 = ssub.s32 %s15, 1
        // Predicated region
        $region13: #{upsample_cnn_forward.1} parent=11 // pred_check
          %p192 = pneg %p88
        $region14: #{upsample_cnn_forward.1} parent=11 // pred_check_branch
          %194 = sbr.rel (%p192) target = $region16
        $region15: #{upsample_cnn_forward.1} parent=11 // pred_region
          %s196 = ssub.s32 128, 128
          %197 = vsyncadd [#allocation3], %s196
          %s198 = sshll.u32 [#allocation2], 4
          %s199 = int_to_ptr.vmem [resolvable:$true] %s198
          %204 = dma.hbm_to_vmem [thread:$0]  %s2, 128, %s199, [#allocation3], 64, 64, 4
        $region16: #{upsample_cnn_forward.1} parent=11 // pred_fallthru
          _
        // Predicated region
        $region17: #{upsample_cnn_forward.1} parent=11 // pred_check
          %p205 = pneg %p109
        $region18: #{upsample_cnn_forward.1} parent=11 // pred_check_branch
          %207 = sbr.rel (%p205) target = $region20
        $region19: #{upsample_cnn_forward.1} parent=11 // pred_region
          %s209 = ssub.s32 16, 16
          %210 = vsyncadd [#allocation5], %s209
          %s212 = sshll.u32 [#allocation4], 4
          %s213 = int_to_ptr.vmem [resolvable:$true] %s212
          %215 = dma.hbm_to_vmem [thread:$0]  %s3, 16, %s213, [#allocation5]
        $region20: #{upsample_cnn_forward.1} parent=11 // pred_fallthru
          _
        // Predicated region
        $region21: #{upsample_cnn_forward.1} parent=11 // pred_check
          %p216 = pneg %p130
        $region22: #{upsample_cnn_forward.1} parent=11 // pred_check_branch
          %218 = sbr.rel (%p216) target = $region24
        $region23: #{upsample_cnn_forward.1} parent=11 // pred_region
          %s220 = ssub.s32 2048, 2048
          %221 = vsyncadd [#allocation5], %s220
          %s222 = sshll.u32 [#allocation6], 4
          %s223 = int_to_ptr.vmem [resolvable:$true] %s222
          %228 = dma.hbm_to_vmem [thread:$0]  %s4, 2048, %s223, [#allocation5], 128, 128, 8
        $region24: #{upsample_cnn_forward.1} parent=11 // pred_fallthru
          _
        // Predicated region
        $region25: #{upsample_cnn_forward.1} parent=11 // pred_check
          %p229 = pneg %p151
        $region26: #{upsample_cnn_forward.1} parent=11 // pred_check_branch
          %231 = sbr.rel (%p229) target = $region28
        $region27: #{upsample_cnn_forward.1} parent=11 // pred_region
          %s233 = ssub.s32 32, 32
          %234 = vsyncadd [#allocation8], %s233
          %s236 = sshll.u32 [#allocation7], 4
          %s237 = int_to_ptr.vmem [resolvable:$true] %s236
          %239 = dma.hbm_to_vmem [thread:$0]  %s5, 32, %s237, [#allocation8]
        $region28: #{upsample_cnn_forward.1} parent=11 // pred_fallthru
          _
      $region12: #{upsample_cnn_forward.1} parent=5 // pred_fallthru
        _
      %p240 = scmp.lt.s32.totalorder %s15, 2
      // Predicated region
      $region29: #{upsample_cnn_forward.1} parent=5 // pred_check
        %p241 = pneg %p240
      $region30: #{upsample_cnn_forward.1} parent=5 // pred_check_branch
        %243 = sbr.rel (%p241) target = $region32
      $region31: #{upsample_cnn_forward.1} parent=5 // pred_region
        // Predicated region
        $region33: #{upsample_cnn_forward.1} parent=31 // pred_check
          %p244 = pneg %p35
        $region34: #{upsample_cnn_forward.1} parent=31 // pred_check_branch
          %246 = sbr.rel (%p244) target = $region36
        $region35: #{upsample_cnn_forward.1} parent=31 // pred_region
          %s247 = smul.u32 8, %s15
          %p248 = scmp.lt.s32.totalorder %s247, 15
          %s249 = scalar_select %p248, %s247, 15
          %s250 = smul.addr %s249, 4
          %s251 = scalar_lea.vmem %s0, %s250
          %s252 = smul.u32 8, %s15
        $region36: #{upsample_cnn_forward.1} parent=31 // pred_fallthru
          _
        // Predicated region
        $region37: #{upsample_cnn_forward.1} parent=31 // pred_check
          %p253 = pneg %p61
        $region38: #{upsample_cnn_forward.1} parent=31 // pred_check_branch
          %255 = sbr.rel (%p253) target = $region40
        $region39: #{upsample_cnn_forward.1} parent=31 // pred_region
          %s256 = smul.u32 8, %s15
          %p257 = scmp.lt.s32.totalorder %s256, 15
          %s258 = scalar_select %p257, %s256, 15
          %s259 = smul.addr %s258, 4
          %s260 = scalar_lea.vmem %s1, %s259
          %s261 = smul.u32 8, %s15
        $region40: #{upsample_cnn_forward.1} parent=31 // pred_fallthru
          _
      $region32: #{upsample_cnn_forward.1} parent=5 // pred_fallthru
        _
      %p262 = scmp.le.s32.totalorder 1, %s15
      %p263 = scmp.lt.s32.totalorder %s15, 3
      %p264 = pnand %p262, %p263
      %p265 = pneg %p264
      // Predicated region
      $region41: #{upsample_cnn_forward.1} parent=5 // pred_check
        _
      $region42: #{upsample_cnn_forward.1} parent=5 // pred_check_branch
        %267 = sbr.rel (%p264) target = $region44
      $region43: #{upsample_cnn_forward.1} parent=5 // pred_region
        %s268 = ssub.s32 %s15, 1
        // Predicated region
        $region45: #{upsample_cnn_forward.1} parent=43 // pred_check
          %p269 = pneg %p88
        $region46: #{upsample_cnn_forward.1} parent=43 // pred_check_branch
          %271 = sbr.rel (%p269) target = $region48
        $region47: #{upsample_cnn_forward.1} parent=43 // pred_region
          %272 = dma.done [#allocation3], 128
        $region48: #{upsample_cnn_forward.1} parent=43 // pred_fallthru
          _
        // Predicated region
        $region49: #{upsample_cnn_forward.1} parent=43 // pred_check
          %p273 = pneg %p109
        $region50: #{upsample_cnn_forward.1} parent=43 // pred_check_branch
          %275 = sbr.rel (%p273) target = $region52
        $region51: #{upsample_cnn_forward.1} parent=43 // pred_region
          %276 = dma.done [#allocation5], 16
        $region52: #{upsample_cnn_forward.1} parent=43 // pred_fallthru
          _
        // Predicated region
        $region53: #{upsample_cnn_forward.1} parent=43 // pred_check
          %p277 = pneg %p130
        $region54: #{upsample_cnn_forward.1} parent=43 // pred_check_branch
          %279 = sbr.rel (%p277) target = $region56
        $region55: #{upsample_cnn_forward.1} parent=43 // pred_region
          %280 = dma.done [#allocation5], 2048
        $region56: #{upsample_cnn_forward.1} parent=43 // pred_fallthru
          _
        // Predicated region
        $region57: #{upsample_cnn_forward.1} parent=43 // pred_check
          %p281 = pneg %p151
        $region58: #{upsample_cnn_forward.1} parent=43 // pred_check_branch
          %283 = sbr.rel (%p281) target = $region60
        $region59: #{upsample_cnn_forward.1} parent=43 // pred_region
          %284 = dma.done [#allocation8], 32
        $region60: #{upsample_cnn_forward.1} parent=43 // pred_fallthru
          _
        %s285 = smul.u32 8, %s20
        %p286 = scmp.lt.s32.totalorder %s285, 15
        %s287 = scalar_select %p286, %s285, 15
        %s288 = smul.addr %s287, 4
        %s289 = scalar_lea.vmem %s0, %s288
        %p290 = pneg %p41
        %p291 = pneg %p38
        %s292 = smul.u32 8, %s20
        %p293 = scmp.lt.s32.totalorder %s292, 15
        %s294 = scalar_select %p293, %s292, 15
        %s295 = smul.addr %s294, 4
        %s296 = scalar_lea.vmem %s1, %s295
        %p297 = pneg %p67
        %p298 = pneg %p64
        %p299 = pneg %p88
        %p300 = pneg %p85
        %p301 = pneg %p109
        %p302 = pneg %p106
        %p303 = pneg %p130
        %p304 = pneg %p127
        %p305 = pneg %p151
        %p306 = pneg %p148
        %p307 = pneg %p177
        %p308 = pneg %p174
        %s309 = smul.u32 8, %s20
        %p310 = scmp.lt.s32.totalorder %s309, 15
        %s311 = scalar_select %p310, %s309, 15
        %s312 = smul.addr %s311, 2
        %s313 = smul.addr %s312, 8
        %s314 = scalar_lea.vmem %s6, %s313
        %s315 = smul.u32 8, %s20
        %p316 = scmp.lt.s32.totalorder %s315, 15
        %s317 = scalar_select %p316, %s315, 15
        %s318 = smul.addr %s317, 4
        %s319 = scalar_lea.vmem %s0, %s318
        %s320 = smul.u32 8, %s20
        %s321 = smul.u32 8, %s20
        %p322 = scmp.lt.s32.totalorder %s321, 15
        %s323 = scalar_select %p322, %s321, 15
        %s324 = smul.addr %s323, 4
        %s325 = scalar_lea.vmem %s1, %s324
        %s326 = smul.u32 8, %s20
        %s327 = smul.u32 8, %s20
        %p328 = scmp.lt.s32.totalorder %s327, 15
        %s329 = scalar_select %p328, %s327, 15
        %s330 = smul.addr %s329, 2
        %s331 = smul.addr %s330, 8
        %s332 = scalar_lea.vmem %s6, %s331
        %s333 = smul.u32 8, %s20
        %v335 = vld [vmem:[%s319] sm:$0xf]
        %v336 = vld [vmem:[%s319 + $0x4] sm:$0xf]
        %v337 = vld [vmem:[%s319 + $0x8] sm:$0xf]
        %v338 = vld [vmem:[%s319 + $0xc] sm:$0xf]
        %v339 = vld [vmem:[%s319 + $0x10] sm:$0xf]
        %v340 = vld [vmem:[%s319 + $0x14] sm:$0xf]
        %v341 = vld [vmem:[%s319 + $0x18] sm:$0xf]
        %v342 = vld [vmem:[%s319 + $0x1c] sm:$0xf]
        %v343 = vld [vmem:[#allocation2] sm:$0xf]
        %v344 = vld [vmem:[#allocation2 + $0x4] sm:$0xf]
        %v345 = vld [vmem:[#allocation4] sm:$0x1]
        %v347 = vlaneseq
        %v348 = vshrl.u32 %v347, 7
        %v349 = vsub.s32 0, %v348
        %v350 = vrot.slane %v345, %v349
        %v360 = vunpack.c.l.b16 %v335
        %v361 = vunpack.c.l.b16 %v336
        %v362 = vunpack.c.l.b16 %v337
        %v363 = vunpack.c.l.b16 %v338
        %v364 = vunpack.c.l.b16 %v339
        %v365 = vunpack.c.l.b16 %v340
        %v366 = vunpack.c.l.b16 %v341
        %v367 = vunpack.c.l.b16 %v342
        %v368 = vpack.c.b16 %v361, %v360
        %v369 = vpack.c.b16 %v363, %v362
        %v370 = vpack.c.b16 %v365, %v364
        %v371 = vpack.c.b16 %v367, %v366
        %v374 = vunpack.c.l.b16 %v343
        %v375 = vunpack.c.l.b16 %v344
        %v376 = vpack.c.b16 %v375, %v374
        %vm378 = vcmask 130048
        %v380 = vsel %vm378, %v368, 0
        %v383 = vsel %vm378, %v369, 0
        %v386 = vsel %vm378, %v370, 0
        %v389 = vsel %vm378, %v371, 0
        %391 = vmatprep.subr.bf16.mxu0 0
        %392 = vmatpush1.bf16.msra.mxu0 %v376
        %393 = vmatprep.subr.bf16.mxu0 0
        %394 = vmatpush1.bf16.msra.mxu0 0
        %395 = vmatprep.subr.bf16.mxu0 0
        %396 = vmatpush1.bf16.msra.mxu0 0
        %397 = vmatprep.subr.bf16.mxu0 0
        %398 = vmatpush1.bf16.msra.mxu0 0
        %399 = vmatprep.subr.bf16.mxu0 0
        %400 = vmatpush1.bf16.msra.mxu0 0
        %401 = vmatprep.subr.bf16.mxu0 0
        %402 = vmatpush1.bf16.msra.mxu0 0
        %403 = vmatprep.subr.bf16.mxu0 0
        %404 = vmatpush1.bf16.msra.mxu0 0
        %405 = vmatprep.subr.bf16.mxu0 0
        %406 = vmatpush1.bf16.msra.mxu0 0
        %407 = vmatprep.subr.bf16.mxu0 0
        %408 = vmatpush1.bf16.msra.mxu0 0
        %409 = vmatprep.subr.bf16.mxu0 0
        %410 = vmatpush1.bf16.msra.mxu0 0
        %411 = vmatprep.subr.bf16.mxu0 0
        %412 = vmatpush1.bf16.msra.mxu0 0
        %413 = vmatprep.subr.bf16.mxu0 0
        %414 = vmatpush1.bf16.msra.mxu0 0
        %415 = vmatprep.subr.bf16.mxu0 0
        %416 = vmatpush1.bf16.msra.mxu0 0
        %417 = vmatprep.subr.bf16.mxu0 0
        %418 = vmatpush1.bf16.msra.mxu0 0
        %419 = vmatprep.subr.bf16.mxu0 0
        %420 = vmatpush1.bf16.msra.mxu0 0
        %421 = vmatprep.subr.bf16.mxu0 0
        %422 = vmatpush1.bf16.msra.mxu0 0
        %423 = vmatprep.mubr.bf16.mxu0 0
        %424 = vmatmul.mubr.bf16.gmra.mrb[0].mxu0 %v380
        %v425 = vpop.f32.mrb[0].mxu0
        %v426 = vadd.f32 %v350, %v425
        %v427 = vpop.f32.mrb[0].mxu0
        %v428 = vpop.f32.mrb[0].mxu0
        %v429 = vadd.f32 %v350, %v428
        %v430 = vpop.f32.mrb[0].mxu0
        %431 = vmatprep.mubr.bf16.mxu0 0
        %432 = vmatmul.mubr.bf16.gmra.mrb[0].mxu0 %v383
        %v433 = vpop.f32.mrb[0].mxu0
        %v434 = vadd.f32 %v350, %v433
        %v435 = vpop.f32.mrb[0].mxu0
        %v436 = vpop.f32.mrb[0].mxu0
        %v437 = vadd.f32 %v350, %v436
        %v438 = vpop.f32.mrb[0].mxu0
        %439 = vmatprep.mubr.bf16.mxu0 0
        %440 = vmatmul.mubr.bf16.gmra.mrb[0].mxu0 %v386
        %v441 = vpop.f32.mrb[0].mxu0
        %v442 = vadd.f32 %v350, %v441
        %v443 = vpop.f32.mrb[0].mxu0
        %v444 = vpop.f32.mrb[0].mxu0
        %v445 = vadd.f32 %v350, %v444
        %v446 = vpop.f32.mrb[0].mxu0
        %447 = vmatprep.mubr.bf16.mxu0 0
        %448 = vmatmul.mubr.bf16.gmra.mrb[0].mxu0 %v389
        %v449 = vpop.f32.mrb[0].mxu0
        %v450 = vadd.f32 %v350, %v449
        %v451 = vpop.f32.mrb[0].mxu0
        %v452 = vpop.f32.mrb[0].mxu0
        %v453 = vadd.f32 %v350, %v452
        %v454 = vpop.f32.mrb[0].mxu0
        %455 = vdwg.mxu0
        %v456 = vmul.f32 %v426, 0.2
        %v457 = vmul.f32 %v429, 0.2
        %v458 = vmul.f32 %v434, 0.2
        %v459 = vmul.f32 %v437, 0.2
        %v460 = vmul.f32 %v442, 0.2
        %v461 = vmul.f32 %v445, 0.2
        %v462 = vmul.f32 %v450, 0.2
        %v463 = vmul.f32 %v453, 0.2
        %v464 = vmax.f32 %v426, %v456
        %v465 = vmax.f32 %v429, %v457
        %v466 = vmax.f32 %v434, %v458
        %v467 = vmax.f32 %v437, %v459
        %v468 = vmax.f32 %v442, %v460
        %v469 = vmax.f32 %v445, %v461
        %v470 = vmax.f32 %v450, %v462
        %v471 = vmax.f32 %v453, %v463
        %v472 = vpack.c.bf16 %v465, %v464
        %v473 = vpack.c.bf16 %v467, %v466
        %v474 = vpack.c.bf16 %v469, %v468
        %v475 = vpack.c.bf16 %v471, %v470
        %v476 = vld [vmem:[#allocation6] sm:$0xff]
        %v477 = vld [vmem:[#allocation6 + $0x8] sm:$0xff]
        %v478 = vld [vmem:[#allocation6 + $0x10] sm:$0xff]
        %v479 = vld [vmem:[#allocation6 + $0x18] sm:$0xff]
        %v480 = vld [vmem:[#allocation6 + $0x20] sm:$0xff]
        %v481 = vld [vmem:[#allocation6 + $0x28] sm:$0xff]
        %v482 = vld [vmem:[#allocation6 + $0x30] sm:$0xff]
        %v483 = vld [vmem:[#allocation6 + $0x38] sm:$0xff]
        %v484 = vld [vmem:[#allocation6 + $0x40] sm:$0xff]
        %v485 = vld [vmem:[#allocation6 + $0x48] sm:$0xff]
        %v486 = vld [vmem:[#allocation6 + $0x50] sm:$0xff]
        %v487 = vld [vmem:[#allocation6 + $0x58] sm:$0xff]
        %v488 = vld [vmem:[#allocation6 + $0x60] sm:$0xff]
        %v489 = vld [vmem:[#allocation6 + $0x68] sm:$0xff]
        %v490 = vld [vmem:[#allocation6 + $0x70] sm:$0xff]
        %v491 = vld [vmem:[#allocation6 + $0x78] sm:$0xff]
        %v492 = vld [vmem:[%s325] sm:$0xf]
        %v493 = vld [vmem:[%s325 + $0x4] sm:$0xf]
        %v494 = vld [vmem:[%s325 + $0x8] sm:$0xf]
        %v495 = vld [vmem:[%s325 + $0xc] sm:$0xf]
        %v496 = vld [vmem:[%s325 + $0x10] sm:$0xf]
        %v497 = vld [vmem:[%s325 + $0x14] sm:$0xf]
        %v498 = vld [vmem:[%s325 + $0x18] sm:$0xf]
        %v499 = vld [vmem:[%s325 + $0x1c] sm:$0xf]
        %v508 = vunpack.c.l.b16 %v492
        %v509 = vunpack.c.l.b16 %v493
        %v510 = vunpack.c.l.b16 %v494
        %v511 = vunpack.c.l.b16 %v495
        %v512 = vunpack.c.l.b16 %v496
        %v513 = vunpack.c.l.b16 %v497
        %v514 = vunpack.c.l.b16 %v498
        %v515 = vunpack.c.l.b16 %v499
        %v516 = vpack.c.b16 %v509, %v508
        %v517 = vpack.c.b16 %v511, %v510
        %v518 = vpack.c.b16 %v513, %v512
        %v519 = vpack.c.b16 %v515, %v514
        %v528 = vunpack.c.l.b16 %v484
        %v529 = vunpack.c.h.b16 %v484
        %v530 = vunpack.c.l.b16 %v485
        %v531 = vunpack.c.h.b16 %v485
        %v532 = vunpack.c.l.b16 %v486
        %v533 = vunpack.c.h.b16 %v486
        %v534 = vunpack.c.l.b16 %v487
        %v535 = vunpack.c.h.b16 %v487
        %v536 = vunpack.c.l.b16 %v488
        %v537 = vunpack.c.h.b16 %v488
        %v538 = vunpack.c.l.b16 %v489
        %v539 = vunpack.c.h.b16 %v489
        %v540 = vunpack.c.l.b16 %v490
        %v541 = vunpack.c.h.b16 %v490
        %v542 = vunpack.c.l.b16 %v491
        %v543 = vunpack.c.h.b16 %v491
        %v544 = vpack.c.b16 %v530, %v528
        %v545 = vpack.c.b16 %v531, %v529
        %v546 = vpack.c.b16 %v534, %v532
        %v547 = vpack.c.b16 %v535, %v533
        %v548 = vpack.c.b16 %v538, %v536
        %v549 = vpack.c.b16 %v539, %v537
        %v550 = vpack.c.b16 %v542, %v540
        %v551 = vpack.c.b16 %v543, %v541
        %vm560 = vcmask 523264
        %v562 = vsel %vm560, %v516, 0
        %v565 = vsel %vm560, %v517, 0
        %v568 = vsel %vm560, %v518, 0
        %v571 = vsel %vm560, %v519, 0
        %573 = vmatprep.subr.bf16.mxu0 %v545
        %574 = vmatpush1.bf16.msra.mxu0 %v544
        %575 = vmatprep.subr.bf16.mxu0 %v547
        %576 = vmatpush1.bf16.msra.mxu0 %v546
        %577 = vmatprep.subr.bf16.mxu0 %v549
        %578 = vmatpush1.bf16.msra.mxu0 %v548
        %579 = vmatprep.subr.bf16.mxu0 %v551
        %580 = vmatpush1.bf16.msra.mxu0 %v550
        %581 = vmatprep.subr.bf16.mxu0 0
        %582 = vmatpush1.bf16.msra.mxu0 0
        %583 = vmatprep.subr.bf16.mxu0 0
        %584 = vmatpush1.bf16.msra.mxu0 0
        %585 = vmatprep.subr.bf16.mxu0 0
        %586 = vmatpush1.bf16.msra.mxu0 0
        %587 = vmatprep.subr.bf16.mxu0 0
        %588 = vmatpush1.bf16.msra.mxu0 0
        %589 = vmatprep.subr.bf16.mxu0 0
        %590 = vmatpush1.bf16.msra.mxu0 0
        %591 = vmatprep.subr.bf16.mxu0 0
        %592 = vmatpush1.bf16.msra.mxu0 0
        %593 = vmatprep.subr.bf16.mxu0 0
        %594 = vmatpush1.bf16.msra.mxu0 0
        %595 = vmatprep.subr.bf16.mxu0 0
        %596 = vmatpush1.bf16.msra.mxu0 0
        %597 = vmatprep.subr.bf16.mxu0 0
        %598 = vmatpush1.bf16.msra.mxu0 0
        %599 = vmatprep.subr.bf16.mxu0 0
        %600 = vmatpush1.bf16.msra.mxu0 0
        %601 = vmatprep.subr.bf16.mxu0 0
        %602 = vmatpush1.bf16.msra.mxu0 0
        %603 = vmatprep.subr.bf16.mxu0 0
        %604 = vmatpush1.bf16.msra.mxu0 0
        %605 = vmatprep.mubr.bf16.mxu0 0
        %606 = vmatmul.mubr.bf16.gmra.mrb[0].mxu0 %v562
        %v607 = vpop.f32.mrb[0].mxu0
        %v608 = vadd.f32 0.0, %v607
        %v609 = vpop.f32.mrb[0].mxu0
        %v610 = vadd.f32 0.0, %v609
        %v611 = vpop.f32.mrb[0].mxu0
        %v612 = vadd.f32 0.0, %v611
        %v613 = vpop.f32.mrb[0].mxu0
        %v614 = vadd.f32 0.0, %v613
        %615 = vmatprep.mubr.bf16.mxu0 0
        %616 = vmatmul.mubr.bf16.gmra.mrb[0].mxu0 %v565
        %v617 = vpop.f32.mrb[0].mxu0
        %v618 = vadd.f32 0.0, %v617
        %v619 = vpop.f32.mrb[0].mxu0
        %v620 = vadd.f32 0.0, %v619
        %v621 = vpop.f32.mrb[0].mxu0
        %v622 = vadd.f32 0.0, %v621
        %v623 = vpop.f32.mrb[0].mxu0
        %v624 = vadd.f32 0.0, %v623
        %625 = vmatprep.mubr.bf16.mxu0 0
        %626 = vmatmul.mubr.bf16.gmra.mrb[0].mxu0 %v568
        %v627 = vpop.f32.mrb[0].mxu0
        %v628 = vadd.f32 0.0, %v627
        %v629 = vpop.f32.mrb[0].mxu0
        %v630 = vadd.f32 0.0, %v629
        %v631 = vpop.f32.mrb[0].mxu0
        %v632 = vadd.f32 0.0, %v631
        %v633 = vpop.f32.mrb[0].mxu0
        %v634 = vadd.f32 0.0, %v633
        %635 = vmatprep.mubr.bf16.mxu0 0
        %636 = vmatmul.mubr.bf16.gmra.mrb[0].mxu0 %v571
        %v637 = vpop.f32.mrb[0].mxu0
        %v638 = vadd.f32 0.0, %v637
        %v639 = vpop.f32.mrb[0].mxu0
        %v640 = vadd.f32 0.0, %v639
        %v641 = vpop.f32.mrb[0].mxu0
        %v642 = vadd.f32 0.0, %v641
        %v643 = vpop.f32.mrb[0].mxu0
        %v644 = vadd.f32 0.0, %v643
        %645 = vdwg.mxu0
        %v654 = vunpack.c.l.b16 %v476
        %v655 = vunpack.c.h.b16 %v476
        %v656 = vunpack.c.l.b16 %v477
        %v657 = vunpack.c.h.b16 %v477
        %v658 = vunpack.c.l.b16 %v478
        %v659 = vunpack.c.h.b16 %v478
        %v660 = vunpack.c.l.b16 %v479
        %v661 = vunpack.c.h.b16 %v479
        %v662 = vunpack.c.l.b16 %v480
        %v663 = vunpack.c.h.b16 %v480
        %v664 = vunpack.c.l.b16 %v481
        %v665 = vunpack.c.h.b16 %v481
        %v666 = vunpack.c.l.b16 %v482
        %v667 = vunpack.c.h.b16 %v482
        %v668 = vunpack.c.l.b16 %v483
        %v669 = vunpack.c.h.b16 %v483
        %v670 = vpack.c.b16 %v656, %v654
        %v671 = vpack.c.b16 %v657, %v655
        %v672 = vpack.c.b16 %v660, %v658
        %v673 = vpack.c.b16 %v661, %v659
        %v674 = vpack.c.b16 %v664, %v662
        %v675 = vpack.c.b16 %v665, %v663
        %v676 = vpack.c.b16 %v668, %v666
        %v677 = vpack.c.b16 %v669, %v667
        %v687 = vsel %vm560, %v472, 0
        %v690 = vsel %vm560, %v473, 0
        %v693 = vsel %vm560, %v474, 0
        %v696 = vsel %vm560, %v475, 0
        %698 = vmatprep.subr.bf16.mxu0 %v671
        %699 = vmatpush1.bf16.msra.mxu0 %v670
        %700 = vmatprep.subr.bf16.mxu0 %v673
        %701 = vmatpush1.bf16.msra.mxu0 %v672
        %702 = vmatprep.subr.bf16.mxu0 %v675
        %703 = vmatpush1.bf16.msra.mxu0 %v674
        %704 = vmatprep.subr.bf16.mxu0 %v677
        %705 = vmatpush1.bf16.msra.mxu0 %v676
        %706 = vmatprep.subr.bf16.mxu0 0
        %707 = vmatpush1.bf16.msra.mxu0 0
        %708 = vmatprep.subr.bf16.mxu0 0
        %709 = vmatpush1.bf16.msra.mxu0 0
        %710 = vmatprep.subr.bf16.mxu0 0
        %711 = vmatpush1.bf16.msra.mxu0 0
        %712 = vmatprep.subr.bf16.mxu0 0
        %713 = vmatpush1.bf16.msra.mxu0 0
        %714 = vmatprep.subr.bf16.mxu0 0
        %715 = vmatpush1.bf16.msra.mxu0 0
        %716 = vmatprep.subr.bf16.mxu0 0
        %717 = vmatpush1.bf16.msra.mxu0 0
        %718 = vmatprep.subr.bf16.mxu0 0
        %719 = vmatpush1.bf16.msra.mxu0 0
        %720 = vmatprep.subr.bf16.mxu0 0
        %721 = vmatpush1.bf16.msra.mxu0 0
        %722 = vmatprep.subr.bf16.mxu0 0
        %723 = vmatpush1.bf16.msra.mxu0 0
        %724 = vmatprep.subr.bf16.mxu0 0
        %725 = vmatpush1.bf16.msra.mxu0 0
        %726 = vmatprep.subr.bf16.mxu0 0
        %727 = vmatpush1.bf16.msra.mxu0 0
        %728 = vmatprep.subr.bf16.mxu0 0
        %729 = vmatpush1.bf16.msra.mxu0 0
        %730 = vmatprep.mubr.bf16.mxu0 0
        %731 = vmatmul.mubr.bf16.gmra.mrb[0].mxu0 %v687
        %v732 = vpop.f32.mrb[0].mxu0
        %v733 = vadd.f32 %v608, %v732
        %v734 = vpop.f32.mrb[0].mxu0
        %v735 = vadd.f32 %v610, %v734
        %v736 = vpop.f32.mrb[0].mxu0
        %v737 = vadd.f32 %v612, %v736
        %v738 = vpop.f32.mrb[0].mxu0
        %v739 = vadd.f32 %v614, %v738
        %740 = vmatprep.mubr.bf16.mxu0 0
        %741 = vmatmul.mubr.bf16.gmra.mrb[0].mxu0 %v690
        %v742 = vpop.f32.mrb[0].mxu0
        %v743 = vadd.f32 %v618, %v742
        %v744 = vpop.f32.mrb[0].mxu0
        %v745 = vadd.f32 %v620, %v744
        %v746 = vpop.f32.mrb[0].mxu0
        %v747 = vadd.f32 %v622, %v746
        %v748 = vpop.f32.mrb[0].mxu0
        %v749 = vadd.f32 %v624, %v748
        %750 = vmatprep.mubr.bf16.mxu0 0
        %751 = vmatmul.mubr.bf16.gmra.mrb[0].mxu0 %v693
        %v752 = vpop.f32.mrb[0].mxu0
        %v753 = vadd.f32 %v628, %v752
        %v754 = vpop.f32.mrb[0].mxu0
        %v755 = vadd.f32 %v630, %v754
        %v756 = vpop.f32.mrb[0].mxu0
        %v757 = vadd.f32 %v632, %v756
        %v758 = vpop.f32.mrb[0].mxu0
        %v759 = vadd.f32 %v634, %v758
        %760 = vmatprep.mubr.bf16.mxu0 0
        %761 = vmatmul.mubr.bf16.gmra.mrb[0].mxu0 %v696
        %v762 = vpop.f32.mrb[0].mxu0
        %v763 = vadd.f32 %v638, %v762
        %v764 = vpop.f32.mrb[0].mxu0
        %v765 = vadd.f32 %v640, %v764
        %v766 = vpop.f32.mrb[0].mxu0
        %v767 = vadd.f32 %v642, %v766
        %v768 = vpop.f32.mrb[0].mxu0
        %v769 = vadd.f32 %v644, %v768
        %770 = vdwg.mxu0
        %v771 = vld [vmem:[#allocation7] sm:$0x3]
        %v773 = vlaneseq
        %v774 = vshrl.u32 %v773, 7
        %v775 = vsub.s32 0, %v774
        %v776 = vrot.slane %v771, %v775
        %v777 = vlaneseq
        %v778 = vshrl.u32 %v777, 7
        %v779 = vsub.s32 1, %v778
        %v780 = vrot.slane %v771, %v779
        %v783 = vadd.f32 %v733, %v776
        %v784 = vadd.f32 %v735, %v780
        %v785 = vadd.f32 %v737, %v776
        %v786 = vadd.f32 %v739, %v780
        %v787 = vadd.f32 %v743, %v776
        %v788 = vadd.f32 %v745, %v780
        %v789 = vadd.f32 %v747, %v776
        %v790 = vadd.f32 %v749, %v780
        %v791 = vadd.f32 %v753, %v776
        %v792 = vadd.f32 %v755, %v780
        %v793 = vadd.f32 %v757, %v776
        %v794 = vadd.f32 %v759, %v780
        %v795 = vadd.f32 %v763, %v776
        %v796 = vadd.f32 %v765, %v780
        %v797 = vadd.f32 %v767, %v776
        %v798 = vadd.f32 %v769, %v780
        %v799 = vmul.f32 %v783, 0.2
        %v800 = vmul.f32 %v784, 0.2
        %v801 = vmul.f32 %v785, 0.2
        %v802 = vmul.f32 %v786, 0.2
        %v803 = vmul.f32 %v787, 0.2
        %v804 = vmul.f32 %v788, 0.2
        %v805 = vmul.f32 %v789, 0.2
        %v806 = vmul.f32 %v790, 0.2
        %v807 = vmul.f32 %v791, 0.2
        %v808 = vmul.f32 %v792, 0.2
        %v809 = vmul.f32 %v793, 0.2
        %v810 = vmul.f32 %v794, 0.2
        %v811 = vmul.f32 %v795, 0.2
        %v812 = vmul.f32 %v796, 0.2
        %v813 = vmul.f32 %v797, 0.2
        %v814 = vmul.f32 %v798, 0.2
        %v815 = vmax.f32 %v783, %v799
        %v816 = vmax.f32 %v784, %v800
        %v817 = vmax.f32 %v785, %v801
        %v818 = vmax.f32 %v786, %v802
        %v819 = vmax.f32 %v787, %v803
        %v820 = vmax.f32 %v788, %v804
        %v821 = vmax.f32 %v789, %v805
        %v822 = vmax.f32 %v790, %v806
        %v823 = vmax.f32 %v791, %v807
        %v824 = vmax.f32 %v792, %v808
        %v825 = vmax.f32 %v793, %v809
        %v826 = vmax.f32 %v794, %v810
        %v827 = vmax.f32 %v795, %v811
        %v828 = vmax.f32 %v796, %v812
        %v829 = vmax.f32 %v797, %v813
        %v830 = vmax.f32 %v798, %v814
        %831 = vst [vmem:[%s332] sm:$0xff] %v815
        %832 = vst [vmem:[%s332 + $0x8] sm:$0xff] %v816
        %833 = vst [vmem:[%s332 + $0x10] sm:$0xff] %v817
        %834 = vst [vmem:[%s332 + $0x18] sm:$0xff] %v818
        %835 = vst [vmem:[%s332 + $0x20] sm:$0xff] %v819
        %836 = vst [vmem:[%s332 + $0x28] sm:$0xff] %v820
        %837 = vst [vmem:[%s332 + $0x30] sm:$0xff] %v821
        %838 = vst [vmem:[%s332 + $0x38] sm:$0xff] %v822
        %839 = vst [vmem:[%s332 + $0x40] sm:$0xff] %v823
        %840 = vst [vmem:[%s332 + $0x48] sm:$0xff] %v824
        %841 = vst [vmem:[%s332 + $0x50] sm:$0xff] %v825
        %842 = vst [vmem:[%s332 + $0x58] sm:$0xff] %v826
        %843 = vst [vmem:[%s332 + $0x60] sm:$0xff] %v827
        %844 = vst [vmem:[%s332 + $0x68] sm:$0xff] %v828
        %845 = vst [vmem:[%s332 + $0x70] sm:$0xff] %v829
        %846 = vst [vmem:[%s332 + $0x78] sm:$0xff] %v830
        %s847 = smul.u32 8, %s20
        %p848 = scmp.lt.s32.totalorder %s847, 15
        %s849 = scalar_select %p848, %s847, 15
        %s850 = smul.addr %s849, 2
        %s851 = smul.addr %s850, 8
        %s852 = scalar_lea.vmem %s6, %s851
        // Predicated region
        $region61: #{upsample_cnn_forward.1} parent=43 // pred_check
          %p853 = pneg %p174
        $region62: #{upsample_cnn_forward.1} parent=43 // pred_check_branch
          %855 = sbr.rel (%p853) target = $region64
        $region63: #{upsample_cnn_forward.1} parent=43 // pred_region
          %s856 = smul.u32 8, %s20
        $region64: #{upsample_cnn_forward.1} parent=43 // pred_fallthru
          _
      $region44: #{upsample_cnn_forward.1} parent=5 // pred_fallthru
        _
      %p857 = scmp.le.s32.totalorder 2, %s15
      // Predicated region
      $region65: #{upsample_cnn_forward.1} parent=5 // pred_check
        %p858 = pneg %p857
      $region66: #{upsample_cnn_forward.1} parent=5 // pred_check_branch
        %860 = sbr.rel (%p858) target = $region68
      $region67: #{upsample_cnn_forward.1} parent=5 // pred_region
        %s861 = ssub.s32 %s15, 2
        // Predicated region
        $region69: #{upsample_cnn_forward.1} parent=67 // pred_check
          %p862 = pneg %p180
        $region70: #{upsample_cnn_forward.1} parent=67 // pred_check_branch
          %864 = sbr.rel (%p862) target = $region72
        $region71: #{upsample_cnn_forward.1} parent=67 // pred_region
          %s865 = smul.u32 8, %s21
          %p866 = scmp.lt.s32.totalorder %s865, 15
          %s867 = scalar_select %p866, %s865, 15
          %s868 = smul.addr %s867, 2
          %s869 = smul.addr %s868, 8
          %s870 = scalar_lea.vmem %s6, %s869
        $region72: #{upsample_cnn_forward.1} parent=67 // pred_fallthru
          _
      $region68: #{upsample_cnn_forward.1} parent=5 // pred_fallthru
        _
    $region6: #{upsample_cnn_forward.1} parent=1 // loop_footer
      %s19 = sadd.s32 1, %s15
    $region7: #{upsample_cnn_forward.1} parent=1 // loop_footer_branch
      %14 = sbr.rel target = $region3
    $region8: #{upsample_cnn_forward.1} parent=1 // loop_exit
      _
    %871 = vsyncpa [#allocation3], 1
    %s872 = scalar_lea.sflag [#allocation3], 1
    %873 = vsyncpa %s872, 1
    %874 = vsyncpa [#allocation5], 1
    %875 = vsyncpa [#allocation8], 1

</llo_original>
